<compile_context>
chip_gen: v5e
topology: v5e:2x2
jax: 0.10.0
libtpu: 0.0.40
codegen_flags: <defaults>
</compile_context>

<pallas_src>
import functools

import jax
import jax.numpy as jnp
from jax.experimental import pallas as pl
from jax.experimental.pallas import tpu as pltpu


def _ff_kernel(x_ref, w1_ref, b1_ref, w2_ref, b2_ref, gamma_ref, beta_ref,
               out_ref, *, pre_lnorm, eps):
    # x_ref block: (rows, d_model) in the input dtype (bf16/f32).
    x = x_ref[...]
    gamma = gamma_ref[...].astype(jnp.float32)   # (1, D)
    beta = beta_ref[...].astype(jnp.float32)     # (1, D)

    def layer_norm(v):                           # v: f32 (rows, D)
        mu = jnp.mean(v, axis=-1, keepdims=True)
        var = jnp.mean((v - mu) * (v - mu), axis=-1, keepdims=True)
        return (v - mu) * jax.lax.rsqrt(var + eps) * gamma + beta

    x_f32 = x.astype(jnp.float32)

    # CoreNet input (pre_lnorm branch is resolved at trace time).
    if pre_lnorm:
        core_in = layer_norm(x_f32).astype(x.dtype)
    else:
        core_in = x

    # Linear 1 (weights pre-transposed to (D, d_inner) in the wrapper) + ReLU.
    h = jnp.dot(core_in, w1_ref[...], preferred_element_type=jnp.float32)
    h = h + b1_ref[...].astype(jnp.float32)
    h = jnp.maximum(h, 0.0).astype(x.dtype)      # back to operand dtype for MXU

    # Linear 2 (weights pre-transposed to (d_inner, D) in the wrapper).
    y = jnp.dot(h, w2_ref[...], preferred_element_type=jnp.float32)
    y = y + b2_ref[...].astype(jnp.float32)

    if pre_lnorm:
        out = x_f32 + y
    else:
        out = layer_norm(x_f32 + y)

    out_ref[...] = out.astype(out_ref.dtype)


def positionwise_ff(inp_sbd, w1, b1, w2, b2, gamma, beta, *,
                    pre_lnorm=False, eps=1e-5, block_rows=256):
    """inp_sbd: (seq_len, batch, d_model). PyTorch Linear weights:
    w1 (d_inner, d_model), w2 (d_model, d_inner). Returns same shape/dtype."""
    S, B, D = inp_sbd.shape
    d_inner = w1.shape[0]
    N = S * B

    # Row-wise op: merge (S, B) -> rows with a pure reshape (no HBM transpose).
    x = inp_sbd.reshape(N, D)

    # One-time layout plumbing in the wrapper (keeps the kernel transpose-free).
    dt = inp_sbd.dtype
    w1t = jnp.transpose(w1).astype(dt)           # (D, d_inner)
    w2t = jnp.transpose(w2).astype(dt)           # (d_inner, D)
    b1r = b1.reshape(1, d_inner)
    b2r = b2.reshape(1, D)
    gamma_r = gamma.reshape(1, D)
    beta_r = beta.reshape(1, D)

    # Row tile: multiple of 8 sublanes, padded so the grid divides evenly.
    br = min(block_rows, N)
    br = max(8, ((br + 7) // 8) * 8)
    n_pad = (-N) % br
    if n_pad:
        x = jnp.pad(x, ((0, n_pad), (0, 0)))
    n_tiles = pl.cdiv(N + n_pad, br)

    kernel = functools.partial(_ff_kernel, pre_lnorm=pre_lnorm, eps=eps)

    out = pl.pallas_call(
        kernel,
        out_shape=jax.ShapeDtypeStruct((N + n_pad, D), dt),
        grid=(n_tiles,),
        in_specs=[
            pl.BlockSpec((br, D), lambda i: (i, 0)),          # x rows
            pl.BlockSpec((D, d_inner), lambda i: (0, 0)),     # W1^T (resident)
            pl.BlockSpec((1, d_inner), lambda i: (0, 0)),     # b1
            pl.BlockSpec((d_inner, D), lambda i: (0, 0)),     # W2^T (resident)
            pl.BlockSpec((1, D), lambda i: (0, 0)),           # b2
            pl.BlockSpec((1, D), lambda i: (0, 0)),           # gamma
            pl.BlockSpec((1, D), lambda i: (0, 0)),           # beta
        ],
        out_specs=pl.BlockSpec((br, D), lambda i: (i, 0)),
        compiler_params=pltpu.CompilerParams(
            dimension_semantics=("parallel",),
            vmem_limit_bytes=64 * 1024 * 1024),
    )(x, w1t, b1r, w2t, b2r, gamma_r, beta_r)

    return out[:N].reshape(S, B, D)


def _reference(inp, w1, b1, w2, b2, gamma, beta, *, pre_lnorm, eps=1e-5):
    """Pure-JAX mirror of the PyTorch forward (eval mode)."""
    x = inp.astype(jnp.float32)

    def ln(v):
        mu = jnp.mean(v, axis=-1, keepdims=True)
        var = jnp.mean((v - mu) ** 2, axis=-1, keepdims=True)
        return (v - mu) / jnp.sqrt(var + eps) * gamma + beta

    def core(v):
        h = jnp.maximum(v @ w1.T + b1, 0.0)
        return h @ w2.T + b2

    if pre_lnorm:
        return x + core(ln(x))
    return ln(x + core(x))


if __name__ == "__main__":
    d_model, d_inner = 32, 64
    seq_len, batch = 8, 2

    key = jax.random.PRNGKey(0)
    ks = jax.random.split(key, 7)
    inp = jax.random.normal(ks[0], (seq_len, batch, d_model), jnp.float32)
    # nn.Linear weights: (out_features, in_features)
    w1 = 0.05 * jax.random.normal(ks[1], (d_inner, d_model), jnp.float32)
    b1 = 0.05 * jax.random.normal(ks[2], (d_inner,), jnp.float32)
    w2 = 0.05 * jax.random.normal(ks[3], (d_model, d_inner), jnp.float32)
    b2 = 0.05 * jax.random.normal(ks[4], (d_model,), jnp.float32)
    # LayerNorm affine params (perturbed from identity so they're exercised)
    gamma = 1.0 + 0.1 * jax.random.normal(ks[5], (d_model,), jnp.float32)
    beta = 0.1 * jax.random.normal(ks[6], (d_model,), jnp.float32)

    for pre_lnorm in (False, True):
        out = positionwise_ff(inp, w1, b1, w2, b2, gamma, beta,
                              pre_lnorm=pre_lnorm)
        out = jax.block_until_ready(out)
        ref = _reference(inp, w1, b1, w2, b2, gamma, beta, pre_lnorm=pre_lnorm)
        assert out.shape == (seq_len, batch, d_model)
        assert jnp.allclose(out, ref, atol=1e-5, rtol=1e-5), \
            f"mismatch vs reference (pre_lnorm={pre_lnorm})"

    print("KERNEL_OK")
</pallas_src>

<mosaic_0001>
module attributes {stable_mosaic.version = 11 : i64} {
  func.func @_ff_kernel(%arg0: i32, %arg1: memref<16x32xf32, #tpu.memory_space<vmem>>, %arg2: memref<32x64xf32, #tpu.memory_space<vmem>>, %arg3: memref<1x64xf32, #tpu.memory_space<vmem>>, %arg4: memref<64x32xf32, #tpu.memory_space<vmem>>, %arg5: memref<1x32xf32, #tpu.memory_space<vmem>>, %arg6: memref<1x32xf32, #tpu.memory_space<vmem>>, %arg7: memref<1x32xf32, #tpu.memory_space<vmem>>, %arg8: memref<16x32xf32, #tpu.memory_space<vmem>>) attributes {dimension_semantics = [#tpu.dimension_semantics<parallel>], iteration_bounds = array<i64: 1>, scalar_prefetch = 0 : i64, scratch_operands = 0 : i64, tpu.core_type = #tpu.core_type<tc>, window_params = [{transform_indices = @transform_0, window_bounds = array<i64: 16, 32>}, {pipeline_mode = #tpu.pipeline_mode<synchronous>, transform_indices = @transform_1, window_bounds = array<i64: 32, 64>}, {pipeline_mode = #tpu.pipeline_mode<synchronous>, transform_indices = @transform_2, window_bounds = array<i64: 1, 64>}, {pipeline_mode = #tpu.pipeline_mode<synchronous>, transform_indices = @transform_3, window_bounds = array<i64: 64, 32>}, {pipeline_mode = #tpu.pipeline_mode<synchronous>, transform_indices = @transform_4, window_bounds = array<i64: 1, 32>}, {pipeline_mode = #tpu.pipeline_mode<synchronous>, transform_indices = @transform_5, window_bounds = array<i64: 1, 32>}, {pipeline_mode = #tpu.pipeline_mode<synchronous>, transform_indices = @transform_6, window_bounds = array<i64: 1, 32>}, {transform_indices = @transform_7, window_bounds = array<i64: 16, 32>}]} {
    %c0 = arith.constant 0 : index
    %c0_0 = arith.constant 0 : index
    %0 = vector.load %arg1[%c0, %c0_0] : memref<16x32xf32, #tpu.memory_space<vmem>>, vector<16x32xf32>
    %c0_1 = arith.constant 0 : index
    %c0_2 = arith.constant 0 : index
    %1 = vector.load %arg6[%c0_1, %c0_2] : memref<1x32xf32, #tpu.memory_space<vmem>>, vector<1x32xf32>
    %c0_3 = arith.constant 0 : index
    %c0_4 = arith.constant 0 : index
    %2 = vector.load %arg7[%c0_3, %c0_4] : memref<1x32xf32, #tpu.memory_space<vmem>>, vector<1x32xf32>
    %c0_5 = arith.constant 0 : index
    %c0_6 = arith.constant 0 : index
    %3 = vector.load %arg2[%c0_5, %c0_6] : memref<32x64xf32, #tpu.memory_space<vmem>>, vector<32x64xf32>
    %cst = arith.constant dense<0.000000e+00> : vector<16x64xf32>
    %4 = tpu.matmul %0, %3, %cst {dimension_numbers = #tpu.dot_dimension_numbers<[1], [0], [0], [1], [0, 0, 1, 1], [], []>} : vector<16x32xf32>, vector<32x64xf32>, vector<16x64xf32> -> vector<16x64xf32>
    %c0_7 = arith.constant 0 : index
    %c0_8 = arith.constant 0 : index
    %5 = vector.load %arg3[%c0_7, %c0_8] : memref<1x64xf32, #tpu.memory_space<vmem>>, vector<1x64xf32>
    %6 = vector.broadcast %5 : vector<1x64xf32> to vector<16x64xf32>
    %7 = arith.addf %4, %6 : vector<16x64xf32>
    %cst_9 = arith.constant 0.000000e+00 : f32
    %8 = vector.broadcast %cst_9 : f32 to vector<16x64xf32>
    %9 = arith.maximumf %7, %8 : vector<16x64xf32>
    %c0_10 = arith.constant 0 : index
    %c0_11 = arith.constant 0 : index
    %10 = vector.load %arg4[%c0_10, %c0_11] : memref<64x32xf32, #tpu.memory_space<vmem>>, vector<64x32xf32>
    %cst_12 = arith.constant dense<0.000000e+00> : vector<16x32xf32>
    %11 = tpu.matmul %9, %10, %cst_12 {dimension_numbers = #tpu.dot_dimension_numbers<[1], [0], [0], [1], [0, 0, 1, 1], [], []>} : vector<16x64xf32>, vector<64x32xf32>, vector<16x32xf32> -> vector<16x32xf32>
    %c0_13 = arith.constant 0 : index
    %c0_14 = arith.constant 0 : index
    %12 = vector.load %arg5[%c0_13, %c0_14] : memref<1x32xf32, #tpu.memory_space<vmem>>, vector<1x32xf32>
    %13 = vector.broadcast %12 : vector<1x32xf32> to vector<16x32xf32>
    %14 = arith.addf %11, %13 : vector<16x32xf32>
    %15 = arith.addf %0, %14 : vector<16x32xf32>
    %cst_15 = arith.constant dense<0.000000e+00> : vector<16xf32>
    %16 = vector.multi_reduction <add>, %15, %cst_15 [1] : vector<16x32xf32> to vector<16xf32>
    %17 = vector.shape_cast %16 : vector<16xf32> to vector<16x1xf32>
    %cst_16 = arith.constant 3.200000e+01 : f32
    %18 = vector.broadcast %cst_16 : f32 to vector<16x1xf32>
    %19 = arith.divf %17, %18 : vector<16x1xf32>
    %20 = vector.broadcast %19 : vector<16x1xf32> to vector<16x32xf32>
    %21 = arith.subf %15, %20 : vector<16x32xf32>
    %22 = vector.broadcast %19 : vector<16x1xf32> to vector<16x32xf32>
    %23 = arith.subf %15, %22 : vector<16x32xf32>
    %24 = arith.mulf %21, %23 : vector<16x32xf32>
    %cst_17 = arith.constant dense<0.000000e+00> : vector<16xf32>
    %25 = vector.multi_reduction <add>, %24, %cst_17 [1] : vector<16x32xf32> to vector<16xf32>
    %26 = vector.shape_cast %25 : vector<16xf32> to vector<16x1xf32>
    %cst_18 = arith.constant 3.200000e+01 : f32
    %27 = vector.broadcast %cst_18 : f32 to vector<16x1xf32>
    %28 = arith.divf %26, %27 : vector<16x1xf32>
    %29 = vector.broadcast %19 : vector<16x1xf32> to vector<16x32xf32>
    %30 = arith.subf %15, %29 : vector<16x32xf32>
    %cst_19 = arith.constant 9.99999974E-6 : f32
    %31 = vector.broadcast %cst_19 : f32 to vector<16x1xf32>
    %32 = arith.addf %28, %31 : vector<16x1xf32>
    %33 = math.rsqrt %32 : vector<16x1xf32>
    %34 = vector.broadcast %33 : vector<16x1xf32> to vector<16x32xf32>
    %35 = arith.mulf %30, %34 : vector<16x32xf32>
    %36 = vector.broadcast %1 : vector<1x32xf32> to vector<16x32xf32>
    %37 = arith.mulf %35, %36 : vector<16x32xf32>
    %38 = vector.broadcast %2 : vector<1x32xf32> to vector<16x32xf32>
    %39 = arith.addf %37, %38 : vector<16x32xf32>
    %c0_20 = arith.constant 0 : index
    %c0_21 = arith.constant 0 : index
    %40 = vector.load %arg8[%c0_20, %c0_21] : memref<16x32xf32, #tpu.memory_space<vmem>>, vector<16x32xf32>
    tpu.vector_store %arg8[%c0_20, %c0_21], %39 {strides = array<i32>} : memref<16x32xf32, #tpu.memory_space<vmem>>, vector<16x32xf32>,
    return
  }
  func.func @transform_0(%arg0: i32) -> (i32, i32) {
    %c0_i32 = arith.constant 0 : i32
    %c0_i32_0 = arith.constant 0 : i32
    return %arg0, %c0_i32 : i32, i32
  }
  func.func @transform_1(%arg0: i32) -> (i32, i32) {
    %c0_i32 = arith.constant 0 : i32
    %c0_i32_0 = arith.constant 0 : i32
    %c0_i32_1 = arith.constant 0 : i32
    return %c0_i32, %c0_i32_0 : i32, i32
  }
  func.func @transform_2(%arg0: i32) -> (i32, i32) {
    %c0_i32 = arith.constant 0 : i32
    %c0_i32_0 = arith.constant 0 : i32
    %c0_i32_1 = arith.constant 0 : i32
    return %c0_i32, %c0_i32_0 : i32, i32
  }
  func.func @transform_3(%arg0: i32) -> (i32, i32) {
    %c0_i32 = arith.constant 0 : i32
    %c0_i32_0 = arith.constant 0 : i32
    %c0_i32_1 = arith.constant 0 : i32
    return %c0_i32, %c0_i32_0 : i32, i32
  }
  func.func @transform_4(%arg0: i32) -> (i32, i32) {
    %c0_i32 = arith.constant 0 : i32
    %c0_i32_0 = arith.constant 0 : i32
    %c0_i32_1 = arith.constant 0 : i32
    return %c0_i32, %c0_i32_0 : i32, i32
  }
  func.func @transform_5(%arg0: i32) -> (i32, i32) {
    %c0_i32 = arith.constant 0 : i32
    %c0_i32_0 = arith.constant 0 : i32
    %c0_i32_1 = arith.constant 0 : i32
    return %c0_i32, %c0_i32_0 : i32, i32
  }
  func.func @transform_6(%arg0: i32) -> (i32, i32) {
    %c0_i32 = arith.constant 0 : i32
    %c0_i32_0 = arith.constant 0 : i32
    %c0_i32_1 = arith.constant 0 : i32
    return %c0_i32, %c0_i32_0 : i32, i32
  }
  func.func @transform_7(%arg0: i32) -> (i32, i32) {
    %c0_i32 = arith.constant 0 : i32
    %c0_i32_0 = arith.constant 0 : i32
    return %arg0, %c0_i32 : i32, i32
  }
}

</mosaic_0001>

<llo_original>
// kernel: tpu_custom_call.1
$region0: #{tpu_custom_call.1}
  #allocation0 [shape = 'u32[]', space=smem, size = 0x4, offset = 0x4, fixed_abs, tag = 'smem constant byte address 0x4 - core index']
  #allocation1 [shape = 'u32[72,128]{1,0:T(1,128)}', space=vmem, size = 0x9000, scoped, tag = 'internal scratch']
  %s0 = inlined_call_operand.vmem [shape: f32[16,32], index: 0, kind: input, shape index: {}]
  %s1 = inlined_call_operand.vmem [shape: f32[32,64], index: 1, kind: input, shape index: {}]
  %s2 = inlined_call_operand.vmem [shape: f32[1,64], index: 2, kind: input, shape index: {}]
  %s3 = inlined_call_operand.vmem [shape: f32[64,32], index: 3, kind: input, shape index: {}]
  %s4 = inlined_call_operand.vmem [shape: f32[1,32], index: 4, kind: input, shape index: {}]
  %s5 = inlined_call_operand.vmem [shape: f32[1,32], index: 5, kind: input, shape index: {}]
  %s6 = inlined_call_operand.vmem [shape: f32[1,32], index: 6, kind: input, shape index: {}]
  %s7 = inlined_call_operand.hbm [shape: f32[16,32], index: 7, kind: output, shape index: {}]
  %s8 = sld [smem:[#allocation0]]
  $region38: #{tpu_custom_call.1} parent=0
    _
  %s10 = ssub.s32 1, %s8
  %s11 = scalar_select 0, %s10, %s8
  $region1: #{tpu_custom_call.1} parent=0
    #allocation2 [shape = 'u8[8192]{0}', space=vmem, size = 0x2000, scoped, tag = 'output window, operand 0, single buffered']
    #allocation3 [shape = 's32[1]{0}', space=sflag, size = 0x4, scoped, tag = 'scoped memory for tpu_custom_call.1']
    %12 = vsyncpa [#allocation3], 0
    // Predicated region
    $region2: #{tpu_custom_call.1} parent=1 // pred_check
      _
    $region3: #{tpu_custom_call.1} parent=1 // pred_check_branch
      %14 = sbr.rel (0) target = $region5
    $region4: #{tpu_custom_call.1} parent=1 // pred_region
      _
    $region5: #{tpu_custom_call.1} parent=1 // pred_fallthru
      _
    // Predicated region
    $region6: #{tpu_custom_call.1} parent=1 // pred_check
      _
    $region7: #{tpu_custom_call.1} parent=1 // pred_check_branch
      %16 = sbr.rel (0) target = $region9
    $region8: #{tpu_custom_call.1} parent=1 // pred_region
      _
    $region9: #{tpu_custom_call.1} parent=1 // pred_fallthru
      _
    // Predicated region
    $region10: #{tpu_custom_call.1} parent=1 // pred_check
      _
    $region11: #{tpu_custom_call.1} parent=1 // pred_check_branch
      %18 = sbr.rel (0) target = $region13
    $region12: #{tpu_custom_call.1} parent=1 // pred_region
      _
    $region13: #{tpu_custom_call.1} parent=1 // pred_fallthru
      _
    // Predicated region
    $region14: #{tpu_custom_call.1} parent=1 // pred_check
      _
    $region15: #{tpu_custom_call.1} parent=1 // pred_check_branch
      %20 = sbr.rel (0) target = $region17
    $region16: #{tpu_custom_call.1} parent=1 // pred_region
      _
    $region17: #{tpu_custom_call.1} parent=1 // pred_fallthru
      _
    // Predicated region
    $region18: #{tpu_custom_call.1} parent=1 // pred_check
      _
    $region19: #{tpu_custom_call.1} parent=1 // pred_check_branch
      %22 = sbr.rel (0) target = $region21
    $region20: #{tpu_custom_call.1} parent=1 // pred_region
      _
    $region21: #{tpu_custom_call.1} parent=1 // pred_fallthru
      _
    // Predicated region
    $region22: #{tpu_custom_call.1} parent=1 // pred_check
      _
    $region23: #{tpu_custom_call.1} parent=1 // pred_check_branch
      %24 = sbr.rel (0) target = $region25
    $region24: #{tpu_custom_call.1} parent=1 // pred_region
      _
    $region25: #{tpu_custom_call.1} parent=1 // pred_fallthru
      _
    // Predicated region
    $region26: #{tpu_custom_call.1} parent=1 // pred_check
      _
    $region27: #{tpu_custom_call.1} parent=1 // pred_check_branch
      %26 = sbr.rel (0) target = $region29
    $region28: #{tpu_custom_call.1} parent=1 // pred_region
      _
    $region29: #{tpu_custom_call.1} parent=1 // pred_fallthru
      _
    %v27 = vld [vmem:[%s0] sm:$0xff]
    %v28 = vld [vmem:[%s0 + $0x8] sm:$0xff]
    %v29 = vld [vmem:[%s5] sm:$0x1]
    %v30 = vld [vmem:[%s6] sm:$0x1]
    %v31 = vld [vmem:[%s1] sm:$0xff]
    %v32 = vld [vmem:[%s1 + $0x8] sm:$0xff]
    %v33 = vld [vmem:[%s1 + $0x10] sm:$0xff]
    %v34 = vld [vmem:[%s1 + $0x18] sm:$0xff]
    %v35 = vld [vmem:[%s2] sm:$0x1]
    %v37 = vperm.slane %v35, 0
    %vm39 = vcmask 261120
    %v41 = vsel %vm39, %v27, 0
    %v44 = vsel %vm39, %v28, 0
    %46 = vmatpush.msra.mxu0 0.0
    %47 = vmatpush.msra.mxu0 0.0
    %48 = vmatpush.msra.mxu0 0.0
    %49 = vmatpush.msra.mxu0 0.0
    %50 = vmatpush.msra.mxu0 0.0
    %51 = vmatpush.msra.mxu0 0.0
    %52 = vmatpush.msra.mxu0 0.0
    %53 = vmatpush.msra.mxu0 0.0
    %54 = vmatpush.msra.mxu0 0.0
    %55 = vmatpush.msra.mxu0 0.0
    %56 = vmatpush.msra.mxu0 0.0
    %57 = vmatpush.msra.mxu0 0.0
    %58 = vmatpush.msra.mxu0 %v34
    %59 = vmatpush.msra.mxu0 %v33
    %60 = vmatpush.msra.mxu0 %v32
    %61 = vmatpush.msra.mxu0 %v31
    %62 = vmatmul.f32.gmra.mxu0 %v41
    %v63 = vpop.f32.mrf.mxu0
    %v64 = vadd.f32 %v37, %v63
    %65 = vmatmul.f32.gmra.mxu0 %v44
    %v66 = vpop.f32.mrf.mxu0
    %v67 = vadd.f32 %v37, %v66
    %68 = vdwg.mxu0
    %v69 = vmax.f32 %v64, 0.0
    %v70 = vmax.f32 %v67, 0.0
    %v71 = vld [vmem:[%s3] sm:$0xff]
    %v72 = vld [vmem:[%s3 + $0x8] sm:$0xff]
    %v73 = vld [vmem:[%s3 + $0x10] sm:$0xff]
    %v74 = vld [vmem:[%s3 + $0x18] sm:$0xff]
    %v75 = vld [vmem:[%s3 + $0x20] sm:$0xff]
    %v76 = vld [vmem:[%s3 + $0x28] sm:$0xff]
    %v77 = vld [vmem:[%s3 + $0x30] sm:$0xff]
    %v78 = vld [vmem:[%s3 + $0x38] sm:$0xff]
    %v79 = vld [vmem:[%s4] sm:$0x1]
    %v81 = vperm.slane %v79, 0
    %vm83 = vcmask 523264
    %v85 = vsel %vm83, %v69, 0
    %v88 = vsel %vm83, %v70, 0
    %90 = vmatpush.msra.mxu0 0.0
    %91 = vmatpush.msra.mxu0 0.0
    %92 = vmatpush.msra.mxu0 0.0
    %93 = vmatpush.msra.mxu0 0.0
    %94 = vmatpush.msra.mxu0 0.0
    %95 = vmatpush.msra.mxu0 0.0
    %96 = vmatpush.msra.mxu0 0.0
    %97 = vmatpush.msra.mxu0 0.0
    %98 = vmatpush.msra.mxu0 %v78
    %99 = vmatpush.msra.mxu0 %v77
    %100 = vmatpush.msra.mxu0 %v76
    %101 = vmatpush.msra.mxu0 %v75
    %102 = vmatpush.msra.mxu0 %v74
    %103 = vmatpush.msra.mxu0 %v73
    %104 = vmatpush.msra.mxu0 %v72
    %105 = vmatpush.msra.mxu0 %v71
    %106 = vmatmul.f32.gmra.mxu0 %v85
    %v107 = vpop.f32.mrf.mxu0
    %v108 = vadd.f32 %v81, %v107
    %109 = vmatmul.f32.gmra.mxu0 %v88
    %v110 = vpop.f32.mrf.mxu0
    %v111 = vadd.f32 %v81, %v110
    %112 = vdwg.mxu0
    %v113 = vadd.f32 %v27, %v108
    %v114 = vadd.f32 %v28, %v111
    %v115 = vsel %vm39, %v113, 0.0
    %116 = vadd.xlane.f32.xlu0 %v115
    %v117 = vpop.xlane.xlu0 %116
    %v118 = vsel %vm39, %v114, 0.0
    %119 = vadd.xlane.f32.xlu0 %v118
    %v120 = vpop.xlane.xlu0 %119
    %v121 = vrcp.pop 32.0
    %v122 = vmul.f32 32.0, %v121
    %v123 = vsub.f32 1.0, %v122
    %v124 = vmul.f32 %v121, %v123
    %v125 = vadd.f32 %v121, %v124
    %vm126 = vweird.f32 %v121
    %v127 = vsel %vm126, %v121, %v125
    %v128 = vmul.f32 %v117, %v127
    %v129 = vmul.f32 %v120, %v127
    %v130 = vsub.f32 %v113, %v128
    %v131 = vsub.f32 %v114, %v129
    %v132 = vmul.f32 %v130, %v130
    %v133 = vmul.f32 %v131, %v131
    %v134 = vsel %vm39, %v132, 0.0
    %135 = vadd.xlane.f32.xlu0 %v134
    %v136 = vpop.xlane.xlu0 %135
    %v137 = vsel %vm39, %v133, 0.0
    %138 = vadd.xlane.f32.xlu0 %v137
    %v139 = vpop.xlane.xlu0 %138
    %v140 = vmul.f32 %v136, %v127
    %v141 = vmul.f32 %v139, %v127
    %v142 = vadd.f32 %v140, 1e-05
    %v143 = vadd.f32 %v141, 1e-05
    %v144 = vrsqrt.pop %v142
    %v145 = vmul.f32 %v144, %v142
    %v146 = vmul.f32 %v145, %v144
    %v147 = vmul.f32 0.5, %v146
    %v148 = vsub.f32 1.5, %v147
    %v149 = vmul.f32 %v144, %v148
    %vm150 = vweird.f32 %v142
    %vm151 = vweird.f32 %v144
    %vm152 = vmor %vm150, %vm151
    %v153 = vsel %vm152, %v144, %v149
    %v154 = vrsqrt.pop %v143
    %v155 = vmul.f32 %v154, %v143
    %v156 = vmul.f32 %v155, %v154
    %v157 = vmul.f32 0.5, %v156
    %v158 = vsub.f32 1.5, %v157
    %v159 = vmul.f32 %v154, %v158
    %vm160 = vweird.f32 %v143
    %vm161 = vweird.f32 %v154
    %vm162 = vmor %vm160, %vm161
    %v163 = vsel %vm162, %v154, %v159
    %v164 = vmul.f32 %v130, %v153
    %v165 = vmul.f32 %v131, %v163
    %v167 = vperm.slane %v29, 0
    %v169 = vmul.f32 %v164, %v167
    %v170 = vmul.f32 %v165, %v167
    %v172 = vperm.slane %v30, 0
    %v174 = vadd.f32 %v169, %v172
    %v175 = vadd.f32 %v170, %v172
    %176 = vst.msk [vmem:[#allocation2] sm:$0xff] %vm39, %v174
    %177 = vst.msk [vmem:[#allocation2 + $0x8] sm:$0xff] %vm39, %v175
    // Predicated region
    $region30: #{tpu_custom_call.1} parent=1 // pred_check
      _
    $region31: #{tpu_custom_call.1} parent=1 // pred_check_branch
      %179 = sbr.rel (0) target = $region33
    $region32: #{tpu_custom_call.1} parent=1 // pred_region
      %181 = vsyncadd [#allocation3], 0
      %s182 = sshll.u32 [#allocation2], 4
      %s183 = int_to_ptr.vmem [resolvable:$true] %s182
      %s184 = sshll.u32 %s7, 4
      %s185 = int_to_ptr.hbm [resolvable:$true] %s184
      %190 = dma.vmem_to_hbm [thread:$0]  %s183, 256, %s185, [#allocation3], 128, 128, 8
    $region33: #{tpu_custom_call.1} parent=1 // pred_fallthru
      _
    // Predicated region
    $region34: #{tpu_custom_call.1} parent=1 // pred_check
      _
    $region35: #{tpu_custom_call.1} parent=1 // pred_check_branch
      %192 = sbr.rel (0) target = $region37
    $region36: #{tpu_custom_call.1} parent=1 // pred_region
      %194 = dma.done [#allocation3], 256
    $region37: #{tpu_custom_call.1} parent=1 // pred_fallthru
      _
    %195 = vsyncpa [#allocation3], 1

</llo_original>
